<compile_context>
chip_gen: v6e
topology: v6e:2x2x1
jax: 0.10.0
libtpu: 0.0.40
codegen_flags: <defaults>
</compile_context>

<pallas_src>
import functools

import jax
import jax.numpy as jnp
from jax.experimental import pallas as pl
from jax.experimental.pallas import tpu as pltpu


def _aux_decoder_kernel(h, w, ncp, img_ref, roi_ref, w1s_ref, shift_ref,
                        w3s_ref, b3_ref, masks_ref, out_ref):
    # blocks: img/roi (bgroup, 32, HW); w1s (32, 32) (BN scale pre-folded);
    #         shift (32, 1); w3s (3*ncp, 96) rows [ky*ncp + o], cols kx*32+i;
    #         b3 (ncp, 1); masks (4, HW); out (bgroup, num_classes, HW)
    hw = h * w
    nc = out_ref.shape[1]
    bgroup = out_ref.shape[0]
    f32 = jnp.float32

    # grid-invariant operands: load once, reuse across the image group
    masks = masks_ref[...]
    m_left = masks[0:1, :]     # col >= 1      (kx=0 tap reads column c-1)
    m_right = masks[1:2, :]    # col <= w-2    (kx=2 tap reads column c+1)
    m_top = masks[2:3, :]      # row >= 1      (ky=0 tap reads row r-1)
    m_bot = masks[3:4, :]      # row <= h-2    (ky=2 tap reads row r+1)
    w1s = w1s_ref[...]
    shift = shift_ref[...]
    w3s = w3s_ref[...]
    b3 = b3_ref[...]

    for g in range(bgroup):                                       # static unroll
        # ---- stage 1: add + 1x1 conv (BN scale folded) + shift + ReLU ------
        x = img_ref[g] + roi_ref[g]                               # (32, HW)
        y = jnp.dot(w1s, x, preferred_element_type=f32)           # (32, HW)
        y = jnp.maximum(y + shift, 0.0)

        # ---- stage 2: 3x3 conv, padding=1 -----------------------------------
        # kx taps: lane rolls of y (zero padding via column masks), packed to K=96
        y_l = pltpu.roll(y, 1, axis=1) * m_left                   # y[p-1]
        y_r = pltpu.roll(y, hw - 1, axis=1) * m_right             # y[p+1]
        ypack = jnp.concatenate([y_l, y, y_r], axis=0)            # (96, HW)

        # single stacked MXU dot for all three ky taps
        t = jnp.dot(w3s, ypack, preferred_element_type=f32)       # (3*ncp, HW)

        # ky taps: roll the SMALL (ncp, HW) output slices (commuted past the dot),
        # zero padding via row masks.
        t0 = pltpu.roll(t[0:ncp], w, axis=1) * m_top              # source row r-1
        t1 = t[ncp:2 * ncp]                                       # source row r
        t2 = pltpu.roll(t[2 * ncp:3 * ncp], hw - w, axis=1) * m_bot   # row r+1

        acc = t1 + b3 + t0 + t2                                   # (ncp, HW)
        out_ref[g] = acc[0:nc].astype(out_ref.dtype)


def aux_decoder_forward(feat_image, feat_roi, params):
    """feat_image, feat_roi: (N, 32, H, W) float32. Returns (N, num_classes, H, W)."""
    n, c, h, w = feat_image.shape
    assert c == 32
    hw = h * w
    num_classes = params["w3"].shape[0]
    ncp = -(-num_classes // 8) * 8            # pad out-channels to a sublane tile
    eps = 1e-5

    # Free reshapes (contiguous collapse), no transposes anywhere.
    img = feat_image.reshape(n, c, hw)
    roi = feat_roi.reshape(n, c, hw)

    # Fold BatchNorm (inference) + conv1 bias: scale goes into the 1x1 weights,
    # shift stays as a per-channel add.
    bn_scale = params["gamma"] / jnp.sqrt(params["var"] + eps)
    w1s = params["w1"] * bn_scale[:, None]                               # (32, 32)
    shift = (params["beta"] + (params["b1"] - params["mean"]) * bn_scale).reshape(c, 1)

    # Pack the 3x3 weights for the single stacked kx-im2col matmul:
    #   w3s[ky*ncp + o, kx*32 + i] = w3[o, i, ky, kx]   (rows o>=nc are zero)
    w3 = params["w3"]                                                    # (nc, 32, 3, 3) OIHW
    w3p = jnp.transpose(w3, (2, 3, 1, 0)).reshape(3, 3 * c, num_classes)
    w3p = jnp.transpose(w3p, (0, 2, 1))                                  # (3, nc, 96)
    w3s = jnp.zeros((3, ncp, 3 * c), jnp.float32).at[:, :num_classes, :].set(w3p)
    w3s = w3s.reshape(3 * ncp, 3 * c)                                    # (3*ncp, 96)
    b3p = jnp.zeros((ncp, 1), jnp.float32).at[:num_classes, 0].set(params["b3"])

    # Grid-invariant boundary masks, hoisted out of the kernel (no per-step div/mod).
    col_ge1 = jnp.broadcast_to((jnp.arange(w) >= 1)[None, :], (h, w)).reshape(hw)
    col_lem = jnp.broadcast_to((jnp.arange(w) <= w - 2)[None, :], (h, w)).reshape(hw)
    row_ge1 = jnp.broadcast_to((jnp.arange(h) >= 1)[:, None], (h, w)).reshape(hw)
    row_lem = jnp.broadcast_to((jnp.arange(h) <= h - 2)[:, None], (h, w)).reshape(hw)
    masks = jnp.stack([col_ge1, col_lem, row_ge1, row_lem], 0).astype(jnp.float32)  # (4, HW)

    # Batch grouping: fewer, bigger grid steps (per-step overhead dominates at
    # small H*W).  Largest divisor of N up to 8 images per step.
    bgroup = 1
    for d in range(min(n, 8), 0, -1):
        if n % d == 0:
            bgroup = d
            break

    kernel = functools.partial(_aux_decoder_kernel, h, w, ncp)
    out = pl.pallas_call(
        kernel,
        out_shape=jax.ShapeDtypeStruct((n, num_classes, hw), jnp.float32),
        grid_spec=pltpu.PrefetchScalarGridSpec(
            num_scalar_prefetch=0,
            grid=(n // bgroup,),
            in_specs=[
                pl.BlockSpec((bgroup, c, hw), lambda i: (i, 0, 0)),        # img
                pl.BlockSpec((bgroup, c, hw), lambda i: (i, 0, 0)),        # roi
                pl.BlockSpec((c, c), lambda i: (0, 0)),                    # w1 * bn_scale
                pl.BlockSpec((c, 1), lambda i: (0, 0)),                    # bn shift (+b1)
                pl.BlockSpec((3 * ncp, 3 * c), lambda i: (0, 0)),          # w3 stacked
                pl.BlockSpec((ncp, 1), lambda i: (0, 0)),                  # b3 (padded)
                pl.BlockSpec((4, hw), lambda i: (0, 0)),                   # boundary masks
            ],
            out_specs=pl.BlockSpec((bgroup, num_classes, hw), lambda i: (i, 0, 0)),
        ),
        compiler_params=pltpu.CompilerParams(
            dimension_semantics=("parallel",)),
    )(img, roi, w1s, shift, w3s, b3p, masks)

    # (N, num_classes, H*W) -> (N, num_classes, H, W): free reshape (NCHW).
    return out.reshape(n, num_classes, h, w)


def init_params(key, num_classes=3):
    """Deterministic synthetic parameters matching AuxDecoder's shapes (PyTorch layout)."""
    c = 32
    ks = jax.random.split(key, 8)
    w1 = jax.random.normal(ks[0], (c, c), jnp.float32) * 0.1          # Conv2d(32,32,1) (O,I)
    b1 = jax.random.normal(ks[1], (c,), jnp.float32) * 0.1
    gamma = 1.0 + 0.1 * jax.random.normal(ks[2], (c,), jnp.float32)   # BatchNorm2d(32)
    beta = 0.1 * jax.random.normal(ks[3], (c,), jnp.float32)
    mean = 0.1 * jax.random.normal(ks[4], (c,), jnp.float32)
    var = 1.0 + 0.1 * jnp.abs(jax.random.normal(ks[5], (c,), jnp.float32))
    w3 = jax.random.normal(ks[6], (num_classes, c, 3, 3), jnp.float32) * 0.1  # OIHW
    b3 = jax.random.normal(ks[7], (num_classes,), jnp.float32) * 0.1
    return dict(w1=w1, b1=b1, gamma=gamma, beta=beta, mean=mean, var=var,
                w3=w3, b3=b3)


def _reference(feat_image, feat_roi, params):
    """Pure-JAX reference of the same forward pass (correctness check)."""
    eps = 1e-5
    x = feat_image + feat_roi                                      # NCHW
    y = jax.lax.conv_general_dilated(
        x, params["w1"][:, :, None, None], window_strides=(1, 1), padding="VALID",
        dimension_numbers=("NCHW", "OIHW", "NCHW"),
        precision=jax.lax.Precision.HIGHEST)
    y = y + params["b1"][None, :, None, None]
    s = params["gamma"] / jnp.sqrt(params["var"] + eps)
    y = y * s[None, :, None, None] + (params["beta"] - params["mean"] * s)[None, :, None, None]
    y = jnp.maximum(y, 0.0)
    y = jax.lax.conv_general_dilated(
        y, params["w3"], window_strides=(1, 1), padding=((1, 1), (1, 1)),
        dimension_numbers=("NCHW", "OIHW", "NCHW"),
        precision=jax.lax.Precision.HIGHEST)
    return y + params["b3"][None, :, None, None]


if __name__ == "__main__":
    key = jax.random.PRNGKey(0)
    k_img, k_roi, k_par = jax.random.split(key, 3)

    N, C, H, W = 2, 32, 16, 16          # encoder output is 32 channels (module requirement)
    feat_image = jax.random.normal(k_img, (N, C, H, W), jnp.float32)
    feat_roi = jax.random.normal(k_roi, (N, C, H, W), jnp.float32)
    params = init_params(k_par, num_classes=3)

    out = jax.jit(aux_decoder_forward)(feat_image, feat_roi, params)
    out = jax.block_until_ready(out)

    ref = jax.block_until_ready(_reference(feat_image, feat_roi, params))
    assert out.shape == (N, 3, H, W), out.shape
    # Tolerance covers MXU f32 multi-pass rounding; structural bugs would be O(1).
    assert jnp.allclose(out, ref, rtol=1e-3, atol=1e-3), float(
        jnp.max(jnp.abs(out - ref)))

    print("KERNEL_OK")
</pallas_src>

<mosaic_0001>
module attributes {stable_mosaic.version = 11 : i64} {
  func.func @_aux_decoder_kernel(%arg0: i32, %arg1: memref<2x32x256xf32, #tpu.memory_space<vmem>>, %arg2: memref<2x32x256xf32, #tpu.memory_space<vmem>>, %arg3: memref<32x32xf32, #tpu.memory_space<vmem>>, %arg4: memref<32x1xf32, #tpu.memory_space<vmem>>, %arg5: memref<24x96xf32, #tpu.memory_space<vmem>>, %arg6: memref<8x1xf32, #tpu.memory_space<vmem>>, %arg7: memref<4x256xf32, #tpu.memory_space<vmem>>, %arg8: memref<2x3x256xf32, #tpu.memory_space<vmem>>) attributes {dimension_semantics = [#tpu.dimension_semantics<parallel>], iteration_bounds = array<i64: 1>, scalar_prefetch = 0 : i64, scratch_operands = 0 : i64, tpu.core_type = #tpu.core_type<tc>, window_params = [{transform_indices = @transform_0, window_bounds = array<i64: 2, 32, 256>}, {transform_indices = @transform_1, window_bounds = array<i64: 2, 32, 256>}, {pipeline_mode = #tpu.pipeline_mode<synchronous>, transform_indices = @transform_2, window_bounds = array<i64: 32, 32>}, {pipeline_mode = #tpu.pipeline_mode<synchronous>, transform_indices = @transform_3, window_bounds = array<i64: 32, 1>}, {pipeline_mode = #tpu.pipeline_mode<synchronous>, transform_indices = @transform_4, window_bounds = array<i64: 24, 96>}, {pipeline_mode = #tpu.pipeline_mode<synchronous>, transform_indices = @transform_5, window_bounds = array<i64: 8, 1>}, {pipeline_mode = #tpu.pipeline_mode<synchronous>, transform_indices = @transform_6, window_bounds = array<i64: 4, 256>}, {transform_indices = @transform_7, window_bounds = array<i64: 2, 3, 256>}]} {
    %c0 = arith.constant 0 : index
    %c0_0 = arith.constant 0 : index
    %0 = vector.load %arg7[%c0, %c0_0] : memref<4x256xf32, #tpu.memory_space<vmem>>, vector<4x256xf32>
    %1 = vector.extract_strided_slice %0 {offsets = [0, 0], sizes = [1, 256], strides = [1, 1]} : vector<4x256xf32> to vector<1x256xf32>
    %2 = vector.extract_strided_slice %0 {offsets = [1, 0], sizes = [1, 256], strides = [1, 1]} : vector<4x256xf32> to vector<1x256xf32>
    %3 = vector.extract_strided_slice %0 {offsets = [2, 0], sizes = [1, 256], strides = [1, 1]} : vector<4x256xf32> to vector<1x256xf32>
    %4 = vector.extract_strided_slice %0 {offsets = [3, 0], sizes = [1, 256], strides = [1, 1]} : vector<4x256xf32> to vector<1x256xf32>
    %c0_1 = arith.constant 0 : index
    %c0_2 = arith.constant 0 : index
    %5 = vector.load %arg3[%c0_1, %c0_2] : memref<32x32xf32, #tpu.memory_space<vmem>>, vector<32x32xf32>
    %c0_3 = arith.constant 0 : index
    %c0_4 = arith.constant 0 : index
    %6 = vector.load %arg4[%c0_3, %c0_4] : memref<32x1xf32, #tpu.memory_space<vmem>>, vector<32x1xf32>
    %c0_5 = arith.constant 0 : index
    %c0_6 = arith.constant 0 : index
    %7 = vector.load %arg5[%c0_5, %c0_6] : memref<24x96xf32, #tpu.memory_space<vmem>>, vector<24x96xf32>
    %c0_7 = arith.constant 0 : index
    %c0_8 = arith.constant 0 : index
    %8 = vector.load %arg6[%c0_7, %c0_8] : memref<8x1xf32, #tpu.memory_space<vmem>>, vector<8x1xf32>
    %c0_9 = arith.constant 0 : index
    %c0_10 = arith.constant 0 : index
    %c0_11 = arith.constant 0 : index
    %9 = vector.load %arg1[%c0_9, %c0_10, %c0_11] : memref<2x32x256xf32, #tpu.memory_space<vmem>>, vector<1x32x256xf32>
    %10 = vector.shape_cast %9 : vector<1x32x256xf32> to vector<32x256xf32>
    %c0_12 = arith.constant 0 : index
    %c0_13 = arith.constant 0 : index
    %c0_14 = arith.constant 0 : index
    %11 = vector.load %arg2[%c0_12, %c0_13, %c0_14] : memref<2x32x256xf32, #tpu.memory_space<vmem>>, vector<1x32x256xf32>
    %12 = vector.shape_cast %11 : vector<1x32x256xf32> to vector<32x256xf32>
    %13 = arith.addf %10, %12 : vector<32x256xf32>
    %cst = arith.constant dense<0.000000e+00> : vector<32x256xf32>
    %14 = tpu.matmul %5, %13, %cst {dimension_numbers = #tpu.dot_dimension_numbers<[1], [0], [0], [1], [0, 0, 1, 1], [], []>} : vector<32x32xf32>, vector<32x256xf32>, vector<32x256xf32> -> vector<32x256xf32>
    %15 = vector.broadcast %6 : vector<32x1xf32> to vector<32x256xf32>
    %16 = arith.addf %14, %15 : vector<32x256xf32>
    %cst_15 = arith.constant 0.000000e+00 : f32
    %17 = vector.broadcast %cst_15 : f32 to vector<32x256xf32>
    %18 = arith.maximumf %16, %17 : vector<32x256xf32>
    %c1_i32 = arith.constant 1 : i32
    %19 = tpu.dynamic_rotate %18 by %c1_i32 dim 1 : vector<32x256xf32>, i32 -> vector<32x256xf32>
    %20 = vector.broadcast %1 : vector<1x256xf32> to vector<32x256xf32>
    %21 = arith.mulf %19, %20 : vector<32x256xf32>
    %c255_i32 = arith.constant 255 : i32
    %22 = tpu.dynamic_rotate %18 by %c255_i32 dim 1 : vector<32x256xf32>, i32 -> vector<32x256xf32>
    %23 = vector.broadcast %2 : vector<1x256xf32> to vector<32x256xf32>
    %24 = arith.mulf %22, %23 : vector<32x256xf32>
    %25 = tpu.concatenate %21, %18, %24 in 0 : vector<32x256xf32>, vector<32x256xf32>, vector<32x256xf32> -> vector<96x256xf32>
    %cst_16 = arith.constant dense<0.000000e+00> : vector<24x256xf32>
    %26 = tpu.matmul %7, %25, %cst_16 {dimension_numbers = #tpu.dot_dimension_numbers<[1], [0], [0], [1], [0, 0, 1, 1], [], []>} : vector<24x96xf32>, vector<96x256xf32>, vector<24x256xf32> -> vector<24x256xf32>
    %27 = vector.extract_strided_slice %26 {offsets = [0, 0], sizes = [8, 256], strides = [1, 1]} : vector<24x256xf32> to vector<8x256xf32>
    %c16_i32 = arith.constant 16 : i32
    %28 = tpu.dynamic_rotate %27 by %c16_i32 dim 1 : vector<8x256xf32>, i32 -> vector<8x256xf32>
    %29 = vector.broadcast %3 : vector<1x256xf32> to vector<8x256xf32>
    %30 = arith.mulf %28, %29 : vector<8x256xf32>
    %31 = vector.extract_strided_slice %26 {offsets = [8, 0], sizes = [8, 256], strides = [1, 1]} : vector<24x256xf32> to vector<8x256xf32>
    %32 = vector.extract_strided_slice %26 {offsets = [16, 0], sizes = [8, 256], strides = [1, 1]} : vector<24x256xf32> to vector<8x256xf32>
    %c240_i32 = arith.constant 240 : i32
    %33 = tpu.dynamic_rotate %32 by %c240_i32 dim 1 : vector<8x256xf32>, i32 -> vector<8x256xf32>
    %34 = vector.broadcast %4 : vector<1x256xf32> to vector<8x256xf32>
    %35 = arith.mulf %33, %34 : vector<8x256xf32>
    %36 = vector.broadcast %8 : vector<8x1xf32> to vector<8x256xf32>
    %37 = arith.addf %31, %36 : vector<8x256xf32>
    %38 = arith.addf %37, %30 : vector<8x256xf32>
    %39 = arith.addf %38, %35 : vector<8x256xf32>
    %40 = vector.extract_strided_slice %39 {offsets = [0, 0], sizes = [3, 256], strides = [1, 1]} : vector<8x256xf32> to vector<3x256xf32>
    %c0_17 = arith.constant 0 : index
    %c0_18 = arith.constant 0 : index
    %c0_19 = arith.constant 0 : index
    %41 = vector.load %arg8[%c0_17, %c0_18, %c0_19] : memref<2x3x256xf32, #tpu.memory_space<vmem>>, vector<1x3x256xf32>
    %42 = vector.shape_cast %41 : vector<1x3x256xf32> to vector<3x256xf32>
    %43 = vector.shape_cast %40 : vector<3x256xf32> to vector<1x3x256xf32>
    tpu.vector_store %arg8[%c0_17, %c0_18, %c0_19], %43 {strides = array<i32>} : memref<2x3x256xf32, #tpu.memory_space<vmem>>, vector<1x3x256xf32>,
    %c1 = arith.constant 1 : index
    %c0_20 = arith.constant 0 : index
    %c0_21 = arith.constant 0 : index
    %44 = vector.load %arg1[%c1, %c0_20, %c0_21] : memref<2x32x256xf32, #tpu.memory_space<vmem>>, vector<1x32x256xf32>
    %45 = vector.shape_cast %44 : vector<1x32x256xf32> to vector<32x256xf32>
    %c1_22 = arith.constant 1 : index
    %c0_23 = arith.constant 0 : index
    %c0_24 = arith.constant 0 : index
    %46 = vector.load %arg2[%c1_22, %c0_23, %c0_24] : memref<2x32x256xf32, #tpu.memory_space<vmem>>, vector<1x32x256xf32>
    %47 = vector.shape_cast %46 : vector<1x32x256xf32> to vector<32x256xf32>
    %48 = arith.addf %45, %47 : vector<32x256xf32>
    %cst_25 = arith.constant dense<0.000000e+00> : vector<32x256xf32>
    %49 = tpu.matmul %5, %48, %cst_25 {dimension_numbers = #tpu.dot_dimension_numbers<[1], [0], [0], [1], [0, 0, 1, 1], [], []>} : vector<32x32xf32>, vector<32x256xf32>, vector<32x256xf32> -> vector<32x256xf32>
    %50 = vector.broadcast %6 : vector<32x1xf32> to vector<32x256xf32>
    %51 = arith.addf %49, %50 : vector<32x256xf32>
    %cst_26 = arith.constant 0.000000e+00 : f32
    %52 = vector.broadcast %cst_26 : f32 to vector<32x256xf32>
    %53 = arith.maximumf %51, %52 : vector<32x256xf32>
    %c1_i32_27 = arith.constant 1 : i32
    %54 = tpu.dynamic_rotate %53 by %c1_i32_27 dim 1 : vector<32x256xf32>, i32 -> vector<32x256xf32>
    %55 = vector.broadcast %1 : vector<1x256xf32> to vector<32x256xf32>
    %56 = arith.mulf %54, %55 : vector<32x256xf32>
    %c255_i32_28 = arith.constant 255 : i32
    %57 = tpu.dynamic_rotate %53 by %c255_i32_28 dim 1 : vector<32x256xf32>, i32 -> vector<32x256xf32>
    %58 = vector.broadcast %2 : vector<1x256xf32> to vector<32x256xf32>
    %59 = arith.mulf %57, %58 : vector<32x256xf32>
    %60 = tpu.concatenate %56, %53, %59 in 0 : vector<32x256xf32>, vector<32x256xf32>, vector<32x256xf32> -> vector<96x256xf32>
    %cst_29 = arith.constant dense<0.000000e+00> : vector<24x256xf32>
    %61 = tpu.matmul %7, %60, %cst_29 {dimension_numbers = #tpu.dot_dimension_numbers<[1], [0], [0], [1], [0, 0, 1, 1], [], []>} : vector<24x96xf32>, vector<96x256xf32>, vector<24x256xf32> -> vector<24x256xf32>
    %62 = vector.extract_strided_slice %61 {offsets = [0, 0], sizes = [8, 256], strides = [1, 1]} : vector<24x256xf32> to vector<8x256xf32>
    %c16_i32_30 = arith.constant 16 : i32
    %63 = tpu.dynamic_rotate %62 by %c16_i32_30 dim 1 : vector<8x256xf32>, i32 -> vector<8x256xf32>
    %64 = vector.broadcast %3 : vector<1x256xf32> to vector<8x256xf32>
    %65 = arith.mulf %63, %64 : vector<8x256xf32>
    %66 = vector.extract_strided_slice %61 {offsets = [8, 0], sizes = [8, 256], strides = [1, 1]} : vector<24x256xf32> to vector<8x256xf32>
    %67 = vector.extract_strided_slice %61 {offsets = [16, 0], sizes = [8, 256], strides = [1, 1]} : vector<24x256xf32> to vector<8x256xf32>
    %c240_i32_31 = arith.constant 240 : i32
    %68 = tpu.dynamic_rotate %67 by %c240_i32_31 dim 1 : vector<8x256xf32>, i32 -> vector<8x256xf32>
    %69 = vector.broadcast %4 : vector<1x256xf32> to vector<8x256xf32>
    %70 = arith.mulf %68, %69 : vector<8x256xf32>
    %71 = vector.broadcast %8 : vector<8x1xf32> to vector<8x256xf32>
    %72 = arith.addf %66, %71 : vector<8x256xf32>
    %73 = arith.addf %72, %65 : vector<8x256xf32>
    %74 = arith.addf %73, %70 : vector<8x256xf32>
    %75 = vector.extract_strided_slice %74 {offsets = [0, 0], sizes = [3, 256], strides = [1, 1]} : vector<8x256xf32> to vector<3x256xf32>
    %c1_32 = arith.constant 1 : index
    %c0_33 = arith.constant 0 : index
    %c0_34 = arith.constant 0 : index
    %76 = vector.load %arg8[%c1_32, %c0_33, %c0_34] : memref<2x3x256xf32, #tpu.memory_space<vmem>>, vector<1x3x256xf32>
    %77 = vector.shape_cast %76 : vector<1x3x256xf32> to vector<3x256xf32>
    %78 = vector.shape_cast %75 : vector<3x256xf32> to vector<1x3x256xf32>
    tpu.vector_store %arg8[%c1_32, %c0_33, %c0_34], %78 {strides = array<i32>} : memref<2x3x256xf32, #tpu.memory_space<vmem>>, vector<1x3x256xf32>,
    return
  }
  func.func @transform_0(%arg0: i32) -> (i32, i32, i32) {
    %c0_i32 = arith.constant 0 : i32
    %c0_i32_0 = arith.constant 0 : i32
    %c0_i32_1 = arith.constant 0 : i32
    return %arg0, %c0_i32, %c0_i32_0 : i32, i32, i32
  }
  func.func @transform_1(%arg0: i32) -> (i32, i32, i32) {
    %c0_i32 = arith.constant 0 : i32
    %c0_i32_0 = arith.constant 0 : i32
    %c0_i32_1 = arith.constant 0 : i32
    return %arg0, %c0_i32, %c0_i32_0 : i32, i32, i32
  }
  func.func @transform_2(%arg0: i32) -> (i32, i32) {
    %c0_i32 = arith.constant 0 : i32
    %c0_i32_0 = arith.constant 0 : i32
    %c0_i32_1 = arith.constant 0 : i32
    return %c0_i32, %c0_i32_0 : i32, i32
  }
  func.func @transform_3(%arg0: i32) -> (i32, i32) {
    %c0_i32 = arith.constant 0 : i32
    %c0_i32_0 = arith.constant 0 : i32
    %c0_i32_1 = arith.constant 0 : i32
    return %c0_i32, %c0_i32_0 : i32, i32
  }
  func.func @transform_4(%arg0: i32) -> (i32, i32) {
    %c0_i32 = arith.constant 0 : i32
    %c0_i32_0 = arith.constant 0 : i32
    %c0_i32_1 = arith.constant 0 : i32
    return %c0_i32, %c0_i32_0 : i32, i32
  }
  func.func @transform_5(%arg0: i32) -> (i32, i32) {
    %c0_i32 = arith.constant 0 : i32
    %c0_i32_0 = arith.constant 0 : i32
    %c0_i32_1 = arith.constant 0 : i32
    return %c0_i32, %c0_i32_0 : i32, i32
  }
  func.func @transform_6(%arg0: i32) -> (i32, i32) {
    %c0_i32 = arith.constant 0 : i32
    %c0_i32_0 = arith.constant 0 : i32
    %c0_i32_1 = arith.constant 0 : i32
    return %c0_i32, %c0_i32_0 : i32, i32
  }
  func.func @transform_7(%arg0: i32) -> (i32, i32, i32) {
    %c0_i32 = arith.constant 0 : i32
    %c0_i32_0 = arith.constant 0 : i32
    %c0_i32_1 = arith.constant 0 : i32
    return %arg0, %c0_i32, %c0_i32_0 : i32, i32, i32
  }
}

</mosaic_0001>

<llo_original>
// kernel: aux_decoder_forward.1
$region0: #{aux_decoder_forward.1}
  #allocation0 [shape = 'u32[]', space=smem, size = 0x4, offset = 0x4, fixed_abs, tag = 'smem constant byte address 0x4 - core index']
  #allocation1 [shape = 'u32[144,128]{1,0:T(1,128)}', space=vmem, size = 0x12000, scoped, tag = 'internal scratch']
  %s0 = inlined_call_operand.vmem [shape: f32[2,32,256], index: 0, kind: input, shape index: {}]
  %s1 = inlined_call_operand.vmem [shape: f32[2,32,256], index: 1, kind: input, shape index: {}]
  %s2 = inlined_call_operand.vmem [shape: f32[32,32], index: 2, kind: input, shape index: {}]
  %s3 = inlined_call_operand.vmem [shape: f32[32,1], index: 3, kind: input, shape index: {}]
  %s4 = inlined_call_operand.vmem [shape: f32[24,96], index: 4, kind: input, shape index: {}]
  %s5 = inlined_call_operand.vmem [shape: f32[8,1], index: 5, kind: input, shape index: {}]
  %s6 = inlined_call_operand.vmem [shape: f32[4,256], index: 6, kind: input, shape index: {}]
  %s7 = inlined_call_operand.vmem [shape: f32[2,3,256], index: 7, kind: output, shape index: {}]
  %s8 = sld [smem:[#allocation0]]
  $region38: #{aux_decoder_forward.1} parent=0
    _
  %s10 = ssub.s32 1, %s8
  %s11 = scalar_select 0, %s10, %s8
  // Predicated region
  $region2: #{aux_decoder_forward.1} parent=0 // pred_check
    _
  $region3: #{aux_decoder_forward.1} parent=0 // pred_check_branch
    %13 = sbr.rel (0) target = $region5
  $region4: #{aux_decoder_forward.1} parent=0 // pred_region
    _
  $region5: #{aux_decoder_forward.1} parent=0 // pred_fallthru
    _
  // Predicated region
  $region6: #{aux_decoder_forward.1} parent=0 // pred_check
    _
  $region7: #{aux_decoder_forward.1} parent=0 // pred_check_branch
    %15 = sbr.rel (0) target = $region9
  $region8: #{aux_decoder_forward.1} parent=0 // pred_region
    _
  $region9: #{aux_decoder_forward.1} parent=0 // pred_fallthru
    _
  // Predicated region
  $region10: #{aux_decoder_forward.1} parent=0 // pred_check
    _
  $region11: #{aux_decoder_forward.1} parent=0 // pred_check_branch
    %17 = sbr.rel (0) target = $region13
  $region12: #{aux_decoder_forward.1} parent=0 // pred_region
    _
  $region13: #{aux_decoder_forward.1} parent=0 // pred_fallthru
    _
  // Predicated region
  $region14: #{aux_decoder_forward.1} parent=0 // pred_check
    _
  $region15: #{aux_decoder_forward.1} parent=0 // pred_check_branch
    %19 = sbr.rel (0) target = $region17
  $region16: #{aux_decoder_forward.1} parent=0 // pred_region
    _
  $region17: #{aux_decoder_forward.1} parent=0 // pred_fallthru
    _
  // Predicated region
  $region18: #{aux_decoder_forward.1} parent=0 // pred_check
    _
  $region19: #{aux_decoder_forward.1} parent=0 // pred_check_branch
    %21 = sbr.rel (0) target = $region21
  $region20: #{aux_decoder_forward.1} parent=0 // pred_region
    _
  $region21: #{aux_decoder_forward.1} parent=0 // pred_fallthru
    _
  // Predicated region
  $region22: #{aux_decoder_forward.1} parent=0 // pred_check
    _
  $region23: #{aux_decoder_forward.1} parent=0 // pred_check_branch
    %23 = sbr.rel (0) target = $region25
  $region24: #{aux_decoder_forward.1} parent=0 // pred_region
    _
  $region25: #{aux_decoder_forward.1} parent=0 // pred_fallthru
    _
  // Predicated region
  $region26: #{aux_decoder_forward.1} parent=0 // pred_check
    _
  $region27: #{aux_decoder_forward.1} parent=0 // pred_check_branch
    %25 = sbr.rel (0) target = $region29
  $region28: #{aux_decoder_forward.1} parent=0 // pred_region
    _
  $region29: #{aux_decoder_forward.1} parent=0 // pred_fallthru
    _
  %v26 = vld [vmem:[%s6] sm:$0xff]
  %v27 = vld [vmem:[%s2] sm:$0xff]
  %v28 = vld [vmem:[%s2 + $0x8] sm:$0xff]
  %v29 = vld [vmem:[%s2 + $0x10] sm:$0xff]
  %v30 = vld [vmem:[%s2 + $0x18] sm:$0xff]
  %v31 = vld [vmem:[%s3] sm:$0xff]
  %v32 = vld [vmem:[%s3 + $0x8] sm:$0xff]
  %v33 = vld [vmem:[%s3 + $0x10] sm:$0xff]
  %v34 = vld [vmem:[%s3 + $0x18] sm:$0xff]
  %v35 = vld [vmem:[%s4] sm:$0xff]
  %v36 = vld [vmem:[%s4 + $0x8] sm:$0xff]
  %v37 = vld [vmem:[%s4 + $0x10] sm:$0xff]
  %v38 = vld [vmem:[%s5] sm:$0xff]
  %v39 = vld [vmem:[%s0] sm:$0xff]
  %v40 = vld [vmem:[%s0 + $0x8] sm:$0xff]
  %v41 = vld [vmem:[%s0 + $0x10] sm:$0xff]
  %v42 = vld [vmem:[%s0 + $0x18] sm:$0xff]
  %v43 = vld [vmem:[%s0 + $0x20] sm:$0xff]
  %v44 = vld [vmem:[%s0 + $0x28] sm:$0xff]
  %v45 = vld [vmem:[%s0 + $0x30] sm:$0xff]
  %v46 = vld [vmem:[%s0 + $0x38] sm:$0xff]
  %v47 = vld [vmem:[%s1] sm:$0xff]
  %v48 = vld [vmem:[%s1 + $0x8] sm:$0xff]
  %v49 = vld [vmem:[%s1 + $0x10] sm:$0xff]
  %v50 = vld [vmem:[%s1 + $0x18] sm:$0xff]
  %v51 = vld [vmem:[%s1 + $0x20] sm:$0xff]
  %v52 = vld [vmem:[%s1 + $0x28] sm:$0xff]
  %v53 = vld [vmem:[%s1 + $0x30] sm:$0xff]
  %v54 = vld [vmem:[%s1 + $0x38] sm:$0xff]
  %v55 = vadd.f32 %v39, %v47
  %v56 = vadd.f32 %v40, %v48
  %v57 = vadd.f32 %v41, %v49
  %v58 = vadd.f32 %v42, %v50
  %v59 = vadd.f32 %v43, %v51
  %v60 = vadd.f32 %v44, %v52
  %v61 = vadd.f32 %v45, %v53
  %v62 = vadd.f32 %v46, %v54
  %64 = vset.pattern.permute.xlu0 0
  %65 = vperm.xlu0 %64, %v31
  %v66 = vpop.permute.xlu0 %65
  %69 = vset.pattern.permute.xlu0 0
  %70 = vperm.xlu0 %69, %v32
  %v71 = vpop.permute.xlu0 %70
  %74 = vset.pattern.permute.xlu0 0
  %75 = vperm.xlu0 %74, %v33
  %v76 = vpop.permute.xlu0 %75
  %79 = vset.pattern.permute.xlu0 0
  %80 = vperm.xlu0 %79, %v34
  %v81 = vpop.permute.xlu0 %80
  %vm83 = vcmask 261120
  %v85 = vsel %vm83, %v27, 0
  %v88 = vsel %vm83, %v28, 0
  %v91 = vsel %vm83, %v29, 0
  %v94 = vsel %vm83, %v30, 0
  %96 = vmatprep.subr.mxu0 0.0
  %97 = vmatpush1.msra.mxu0 0.0
  %98 = vmatprep.subr.mxu0 0.0
  %99 = vmatpush1.msra.mxu0 0.0
  %100 = vmatprep.subr.mxu0 0.0
  %101 = vmatpush1.msra.mxu0 0.0
  %102 = vmatprep.subr.mxu0 0.0
  %103 = vmatpush1.msra.mxu0 0.0
  %104 = vmatprep.subr.mxu0 0.0
  %105 = vmatpush1.msra.mxu0 0.0
  %106 = vmatprep.subr.mxu0 0.0
  %107 = vmatpush1.msra.mxu0 0.0
  %108 = vmatprep.subr.mxu0 0.0
  %109 = vmatpush1.msra.mxu0 0.0
  %110 = vmatprep.subr.mxu0 0.0
  %111 = vmatpush1.msra.mxu0 0.0
  %112 = vmatprep.subr.mxu0 0.0
  %113 = vmatpush1.msra.mxu0 0.0
  %114 = vmatprep.subr.mxu0 0.0
  %115 = vmatpush1.msra.mxu0 0.0
  %116 = vmatprep.subr.mxu0 0.0
  %117 = vmatpush1.msra.mxu0 0.0
  %118 = vmatprep.subr.mxu0 0.0
  %119 = vmatpush1.msra.mxu0 0.0
  %120 = vmatprep.subr.mxu0 %v62
  %121 = vmatpush1.msra.mxu0 %v61
  %122 = vmatprep.subr.mxu0 %v60
  %123 = vmatpush1.msra.mxu0 %v59
  %124 = vmatprep.subr.mxu0 %v58
  %125 = vmatpush1.msra.mxu0 %v57
  %126 = vmatprep.subr.mxu0 %v56
  %127 = vmatpush1.msra.mxu0 %v55
  %128 = vmatprep.subr.mxu0 0.0
  %129 = vmatpush2.msra.mxu0 0.0
  %130 = vmatprep.subr.mxu0 0.0
  %131 = vmatpush2.msra.mxu0 0.0
  %132 = vmatprep.subr.mxu0 0.0
  %133 = vmatpush2.msra.mxu0 0.0
  %134 = vmatprep.subr.mxu0 0.0
  %135 = vmatpush2.msra.mxu0 0.0
  %136 = vmatprep.subr.mxu0 0.0
  %137 = vmatpush2.msra.mxu0 0.0
  %138 = vmatprep.subr.mxu0 0.0
  %139 = vmatpush2.msra.mxu0 0.0
  %140 = vmatprep.subr.mxu0 0.0
  %141 = vmatpush2.msra.mxu0 0.0
  %142 = vmatprep.subr.mxu0 0.0
  %143 = vmatpush2.msra.mxu0 0.0
  %144 = vmatprep.subr.mxu0 0.0
  %145 = vmatpush2.msra.mxu0 0.0
  %146 = vmatprep.subr.mxu0 0.0
  %147 = vmatpush2.msra.mxu0 0.0
  %148 = vmatprep.subr.mxu0 0.0
  %149 = vmatpush2.msra.mxu0 0.0
  %150 = vmatprep.subr.mxu0 0.0
  %151 = vmatpush2.msra.mxu0 0.0
  %152 = vmatprep.subr.mxu0 0.0
  %153 = vmatpush2.msra.mxu0 0.0
  %154 = vmatprep.subr.mxu0 0.0
  %155 = vmatpush2.msra.mxu0 0.0
  %156 = vmatprep.subr.mxu0 0.0
  %157 = vmatpush2.msra.mxu0 0.0
  %158 = vmatprep.subr.mxu0 0.0
  %159 = vmatpush2.msra.mxu0 0.0
  %160 = vmatprep.mubr.f32.mxu0 0.0
  %161 = vmatmul.mubr.f32.gmra.mxu0 %v85
  %v162 = vpop.f32.mrf.mxu0
  %v163 = vadd.f32 %v66, %v162
  %v164 = vpop.f32.mrf.mxu0
  %v165 = vadd.f32 %v66, %v164
  %166 = vmatprep.mubr.f32.mxu0 0.0
  %167 = vmatmul.mubr.f32.gmra.mxu0 %v88
  %v168 = vpop.f32.mrf.mxu0
  %v169 = vadd.f32 %v71, %v168
  %v170 = vpop.f32.mrf.mxu0
  %v171 = vadd.f32 %v71, %v170
  %172 = vmatprep.mubr.f32.mxu0 0.0
  %173 = vmatmul.mubr.f32.gmra.mxu0 %v91
  %v174 = vpop.f32.mrf.mxu0
  %v175 = vadd.f32 %v76, %v174
  %v176 = vpop.f32.mrf.mxu0
  %v177 = vadd.f32 %v76, %v176
  %178 = vmatprep.mubr.f32.mxu0 0.0
  %179 = vmatmul.mubr.f32.gmra.mxu0 %v94
  %v180 = vpop.f32.mrf.mxu0
  %v181 = vadd.f32 %v81, %v180
  %v182 = vpop.f32.mrf.mxu0
  %v183 = vadd.f32 %v81, %v182
  %184 = vdwg.mxu0
  %v185 = vmax.f32 %v163, 0.0
  %v186 = vmax.f32 %v165, 0.0
  %v187 = vmax.f32 %v169, 0.0
  %v188 = vmax.f32 %v171, 0.0
  %v189 = vmax.f32 %v175, 0.0
  %v190 = vmax.f32 %v177, 0.0
  %v191 = vmax.f32 %v181, 0.0
  %v192 = vmax.f32 %v183, 0.0
  %193 = vrot.lane.b32.xlu0 %v185, 1
  %v194 = vpop.permute.xlu0 %193
  %195 = vrot.lane.b32.xlu0 %v187, 1
  %v196 = vpop.permute.xlu0 %195
  %197 = vrot.lane.b32.xlu0 %v189, 1
  %v198 = vpop.permute.xlu0 %197
  %199 = vrot.lane.b32.xlu0 %v191, 1
  %v200 = vpop.permute.xlu0 %199
  %201 = vrot.lane.b32.xlu0 %v186, 1
  %v202 = vpop.permute.xlu0 %201
  %203 = vrot.lane.b32.xlu0 %v188, 1
  %v204 = vpop.permute.xlu0 %203
  %205 = vrot.lane.b32.xlu0 %v190, 1
  %v206 = vpop.permute.xlu0 %205
  %207 = vrot.lane.b32.xlu0 %v192, 1
  %v208 = vpop.permute.xlu0 %207
  %v209 = vlaneseq
  %v210 = vand.u32 %v209, 127
  %vm211 = vcmp.lt.s32.totalorder %v210, 1
  %v212 = vsel %vm211, %v194, %v202
  %v213 = vsel %vm211, %v196, %v204
  %v214 = vsel %vm211, %v198, %v206
  %v215 = vsel %vm211, %v200, %v208
  %v216 = vsel %vm211, %v202, %v194
  %v217 = vsel %vm211, %v204, %v196
  %v218 = vsel %vm211, %v206, %v198
  %v219 = vsel %vm211, %v208, %v200
  %v221 = vlaneseq
  %v222 = vshrl.u32 %v221, 7
  %v223 = vsub.s32 0, %v222
  %v224 = vrot.slane %v26, %v223
  %v225 = vlaneseq
  %v226 = vshrl.u32 %v225, 7
  %v227 = vsub.s32 4, %v226
  %v228 = vrot.slane %v26, %v227
  %v231 = vlaneseq
  %v232 = vshrl.u32 %v231, 7
  %v233 = vsub.s32 0, %v232
  %v234 = vrot.slane %v224, %v233
  %v235 = vlaneseq
  %v236 = vshrl.u32 %v235, 7
  %v237 = vsub.s32 0, %v236
  %v238 = vrot.slane %v228, %v237
  %v239 = vmul.f32 %v216, %v234
  %v240 = vmul.f32 %v212, %v238
  %v241 = vmul.f32 %v217, %v234
  %v242 = vmul.f32 %v213, %v238
  %v243 = vmul.f32 %v218, %v234
  %v244 = vmul.f32 %v214, %v238
  %v245 = vmul.f32 %v219, %v234
  %v246 = vmul.f32 %v215, %v238
  %247 = vrot.lane.b32.xlu0 %v185, 127
  %v248 = vpop.permute.xlu0 %247
  %249 = vrot.lane.b32.xlu0 %v187, 127
  %v250 = vpop.permute.xlu0 %249
  %251 = vrot.lane.b32.xlu0 %v189, 127
  %v252 = vpop.permute.xlu0 %251
  %253 = vrot.lane.b32.xlu0 %v191, 127
  %v254 = vpop.permute.xlu0 %253
  %255 = vrot.lane.b32.xlu0 %v186, 127
  %v256 = vpop.permute.xlu0 %255
  %257 = vrot.lane.b32.xlu0 %v188, 127
  %v258 = vpop.permute.xlu0 %257
  %259 = vrot.lane.b32.xlu0 %v190, 127
  %v260 = vpop.permute.xlu0 %259
  %261 = vrot.lane.b32.xlu0 %v192, 127
  %v262 = vpop.permute.xlu0 %261
  %vm263 = vcmp.lt.s32.totalorder %v210, 127
  %v264 = vsel %vm263, %v248, %v256
  %v265 = vsel %vm263, %v250, %v258
  %v266 = vsel %vm263, %v252, %v260
  %v267 = vsel %vm263, %v254, %v262
  %v268 = vsel %vm263, %v256, %v248
  %v269 = vsel %vm263, %v258, %v250
  %v270 = vsel %vm263, %v260, %v252
  %v271 = vsel %vm263, %v262, %v254
  %v272 = vlaneseq
  %v273 = vshrl.u32 %v272, 7
  %v274 = vsub.s32 1, %v273
  %v275 = vrot.slane %v26, %v274
  %v276 = vlaneseq
  %v277 = vshrl.u32 %v276, 7
  %v278 = vsub.s32 5, %v277
  %v279 = vrot.slane %v26, %v278
  %v282 = vlaneseq
  %v283 = vshrl.u32 %v282, 7
  %v284 = vsub.s32 1, %v283
  %v285 = vrot.slane %v275, %v284
  %v286 = vlaneseq
  %v287 = vshrl.u32 %v286, 7
  %v288 = vsub.s32 1, %v287
  %v289 = vrot.slane %v279, %v288
  %v290 = vmul.f32 %v264, %v285
  %v291 = vmul.f32 %v268, %v289
  %v292 = vmul.f32 %v265, %v285
  %v293 = vmul.f32 %v269, %v289
  %v294 = vmul.f32 %v266, %v285
  %v295 = vmul.f32 %v270, %v289
  %v296 = vmul.f32 %v267, %v285
  %v297 = vmul.f32 %v271, %v289
  %vm298 = vcmask 785408
  %v300 = vsel %vm298, %v35, 0
  %v303 = vsel %vm298, %v36, 0
  %v306 = vsel %vm298, %v37, 0
  %308 = vmatprep.subr.mxu0 0.0
  %309 = vmatpush1.msra.mxu0 0.0
  %310 = vmatprep.subr.mxu0 0.0
  %311 = vmatpush1.msra.mxu0 0.0
  %312 = vmatprep.subr.mxu0 0.0
  %313 = vmatpush1.msra.mxu0 0.0
  %314 = vmatprep.subr.mxu0 0.0
  %315 = vmatpush1.msra.mxu0 0.0
  %316 = vmatprep.subr.mxu0 %v297
  %317 = vmatpush1.msra.mxu0 %v296
  %318 = vmatprep.subr.mxu0 %v295
  %319 = vmatpush1.msra.mxu0 %v294
  %320 = vmatprep.subr.mxu0 %v293
  %321 = vmatpush1.msra.mxu0 %v292
  %322 = vmatprep.subr.mxu0 %v291
  %323 = vmatpush1.msra.mxu0 %v290
  %324 = vmatprep.subr.mxu0 %v192
  %325 = vmatpush1.msra.mxu0 %v191
  %326 = vmatprep.subr.mxu0 %v190
  %327 = vmatpush1.msra.mxu0 %v189
  %328 = vmatprep.subr.mxu0 %v188
  %329 = vmatpush1.msra.mxu0 %v187
  %330 = vmatprep.subr.mxu0 %v186
  %331 = vmatpush1.msra.mxu0 %v185
  %332 = vmatprep.subr.mxu0 %v246
  %333 = vmatpush1.msra.mxu0 %v245
  %334 = vmatprep.subr.mxu0 %v244
  %335 = vmatpush1.msra.mxu0 %v243
  %336 = vmatprep.subr.mxu0 %v242
  %337 = vmatpush1.msra.mxu0 %v241
  %338 = vmatprep.subr.mxu0 %v240
  %339 = vmatpush1.msra.mxu0 %v239
  %340 = vmatprep.subr.mxu0 0.0
  %341 = vmatpush2.msra.mxu0 0.0
  %342 = vmatprep.subr.mxu0 0.0
  %343 = vmatpush2.msra.mxu0 0.0
  %344 = vmatprep.subr.mxu0 0.0
  %345 = vmatpush2.msra.mxu0 0.0
  %346 = vmatprep.subr.mxu0 0.0
  %347 = vmatpush2.msra.mxu0 0.0
  %348 = vmatprep.subr.mxu0 0.0
  %349 = vmatpush2.msra.mxu0 0.0
  %350 = vmatprep.subr.mxu0 0.0
  %351 = vmatpush2.msra.mxu0 0.0
  %352 = vmatprep.subr.mxu0 0.0
  %353 = vmatpush2.msra.mxu0 0.0
  %354 = vmatprep.subr.mxu0 0.0
  %355 = vmatpush2.msra.mxu0 0.0
  %356 = vmatprep.subr.mxu0 0.0
  %357 = vmatpush2.msra.mxu0 0.0
  %358 = vmatprep.subr.mxu0 0.0
  %359 = vmatpush2.msra.mxu0 0.0
  %360 = vmatprep.subr.mxu0 0.0
  %361 = vmatpush2.msra.mxu0 0.0
  %362 = vmatprep.subr.mxu0 0.0
  %363 = vmatpush2.msra.mxu0 0.0
  %364 = vmatprep.subr.mxu0 0.0
  %365 = vmatpush2.msra.mxu0 0.0
  %366 = vmatprep.subr.mxu0 0.0
  %367 = vmatpush2.msra.mxu0 0.0
  %368 = vmatprep.subr.mxu0 0.0
  %369 = vmatpush2.msra.mxu0 0.0
  %370 = vmatprep.subr.mxu0 0.0
  %371 = vmatpush2.msra.mxu0 0.0
  %372 = vmatprep.mubr.f32.mxu0 0.0
  %373 = vmatmul.mubr.f32.gmra.mxu0 %v300
  %v374 = vpop.f32.mrf.mxu0
  %v375 = vadd.f32 0.0, %v374
  %v376 = vpop.f32.mrf.mxu0
  %v377 = vadd.f32 0.0, %v376
  %378 = vmatprep.mubr.f32.mxu0 0.0
  %379 = vmatmul.mubr.f32.gmra.mxu0 %v303
  %v380 = vpop.f32.mrf.mxu0
  %v381 = vadd.f32 0.0, %v380
  %v382 = vpop.f32.mrf.mxu0
  %v383 = vadd.f32 0.0, %v382
  %384 = vmatprep.mubr.f32.mxu0 0.0
  %385 = vmatmul.mubr.f32.gmra.mxu0 %v306
  %v386 = vpop.f32.mrf.mxu0
  %v387 = vadd.f32 0.0, %v386
  %v388 = vpop.f32.mrf.mxu0
  %v389 = vadd.f32 0.0, %v388
  %390 = vdwg.mxu0
  %391 = vrot.lane.b32.xlu0 %v375, 16
  %v392 = vpop.permute.xlu0 %391
  %393 = vrot.lane.b32.xlu0 %v377, 16
  %v394 = vpop.permute.xlu0 %393
  %vm395 = vcmp.lt.s32.totalorder %v210, 16
  %v396 = vsel %vm395, %v392, %v394
  %v397 = vsel %vm395, %v394, %v392
  %v398 = vlaneseq
  %v399 = vshrl.u32 %v398, 7
  %v400 = vsub.s32 2, %v399
  %v401 = vrot.slane %v26, %v400
  %v402 = vlaneseq
  %v403 = vshrl.u32 %v402, 7
  %v404 = vsub.s32 6, %v403
  %v405 = vrot.slane %v26, %v404
  %v408 = vlaneseq
  %v409 = vshrl.u32 %v408, 7
  %v410 = vsub.s32 2, %v409
  %v411 = vrot.slane %v401, %v410
  %v412 = vlaneseq
  %v413 = vshrl.u32 %v412, 7
  %v414 = vsub.s32 2, %v413
  %v415 = vrot.slane %v405, %v414
  %v416 = vmul.f32 %v397, %v411
  %v417 = vmul.f32 %v396, %v415
  %418 = vrot.lane.b32.xlu0 %v387, 112
  %v419 = vpop.permute.xlu0 %418
  %420 = vrot.lane.b32.xlu0 %v389, 112
  %v421 = vpop.permute.xlu0 %420
  %vm422 = vcmp.lt.s32.totalorder %v210, 112
  %v423 = vsel %vm422, %v419, %v421
  %v424 = vsel %vm422, %v421, %v419
  %v425 = vlaneseq
  %v426 = vshrl.u32 %v425, 7
  %v427 = vsub.s32 3, %v426
  %v428 = vrot.slane %v26, %v427
  %v429 = vlaneseq
  %v430 = vshrl.u32 %v429, 7
  %v431 = vsub.s32 7, %v430
  %v432 = vrot.slane %v26, %v431
  %v435 = vlaneseq
  %v436 = vshrl.u32 %v435, 7
  %v437 = vsub.s32 3, %v436
  %v438 = vrot.slane %v428, %v437
  %v439 = vlaneseq
  %v440 = vshrl.u32 %v439, 7
  %v441 = vsub.s32 3, %v440
  %v442 = vrot.slane %v432, %v441
  %v443 = vmul.f32 %v423, %v438
  %v444 = vmul.f32 %v424, %v442
  %446 = vset.pattern.permute.xlu0 0
  %447 = vperm.xlu0 %446, %v38
  %v448 = vpop.permute.xlu0 %447
  %v450 = vadd.f32 %v381, %v448
  %v451 = vadd.f32 %v383, %v448
  %v452 = vadd.f32 %v450, %v416
  %v453 = vadd.f32 %v451, %v417
  %v454 = vadd.f32 %v452, %v443
  %v455 = vadd.f32 %v453, %v444
  %v458 = vcombine.low %v454, %v455
  %460 = vst [vmem:[%s7] sm:$0x77] %v458
  %s461 = scalar_lea.vmem %s0, 64
  %v462 = vld [vmem:[%s461] sm:$0xff]
  %v463 = vld [vmem:[%s461 + $0x8] sm:$0xff]
  %v464 = vld [vmem:[%s461 + $0x10] sm:$0xff]
  %v465 = vld [vmem:[%s461 + $0x18] sm:$0xff]
  %v466 = vld [vmem:[%s461 + $0x20] sm:$0xff]
  %v467 = vld [vmem:[%s461 + $0x28] sm:$0xff]
  %v468 = vld [vmem:[%s461 + $0x30] sm:$0xff]
  %v469 = vld [vmem:[%s461 + $0x38] sm:$0xff]
  %s470 = scalar_lea.vmem %s1, 64
  %v471 = vld [vmem:[%s470] sm:$0xff]
  %v472 = vld [vmem:[%s470 + $0x8] sm:$0xff]
  %v473 = vld [vmem:[%s470 + $0x10] sm:$0xff]
  %v474 = vld [vmem:[%s470 + $0x18] sm:$0xff]
  %v475 = vld [vmem:[%s470 + $0x20] sm:$0xff]
  %v476 = vld [vmem:[%s470 + $0x28] sm:$0xff]
  %v477 = vld [vmem:[%s470 + $0x30] sm:$0xff]
  %v478 = vld [vmem:[%s470 + $0x38] sm:$0xff]
  %v479 = vadd.f32 %v462, %v471
  %v480 = vadd.f32 %v463, %v472
  %v481 = vadd.f32 %v464, %v473
  %v482 = vadd.f32 %v465, %v474
  %v483 = vadd.f32 %v466, %v475
  %v484 = vadd.f32 %v467, %v476
  %v485 = vadd.f32 %v468, %v477
  %v486 = vadd.f32 %v469, %v478
  %487 = vmatprep.subr.mxu0 0.0
  %488 = vmatpush1.msra.mxu0 0.0
  %489 = vmatprep.subr.mxu0 0.0
  %490 = vmatpush1.msra.mxu0 0.0
  %491 = vmatprep.subr.mxu0 0.0
  %492 = vmatpush1.msra.mxu0 0.0
  %493 = vmatprep.subr.mxu0 0.0
  %494 = vmatpush1.msra.mxu0 0.0
  %495 = vmatprep.subr.mxu0 0.0
  %496 = vmatpush1.msra.mxu0 0.0
  %497 = vmatprep.subr.mxu0 0.0
  %498 = vmatpush1.msra.mxu0 0.0
  %499 = vmatprep.subr.mxu0 0.0
  %500 = vmatpush1.msra.mxu0 0.0
  %501 = vmatprep.subr.mxu0 0.0
  %502 = vmatpush1.msra.mxu0 0.0
  %503 = vmatprep.subr.mxu0 0.0
  %504 = vmatpush1.msra.mxu0 0.0
  %505 = vmatprep.subr.mxu0 0.0
  %506 = vmatpush1.msra.mxu0 0.0
  %507 = vmatprep.subr.mxu0 0.0
  %508 = vmatpush1.msra.mxu0 0.0
  %509 = vmatprep.subr.mxu0 0.0
  %510 = vmatpush1.msra.mxu0 0.0
  %511 = vmatprep.subr.mxu0 %v486
  %512 = vmatpush1.msra.mxu0 %v485
  %513 = vmatprep.subr.mxu0 %v484
  %514 = vmatpush1.msra.mxu0 %v483
  %515 = vmatprep.subr.mxu0 %v482
  %516 = vmatpush1.msra.mxu0 %v481
  %517 = vmatprep.subr.mxu0 %v480
  %518 = vmatpush1.msra.mxu0 %v479
  %519 = vmatprep.subr.mxu0 0.0
  %520 = vmatpush2.msra.mxu0 0.0
  %521 = vmatprep.subr.mxu0 0.0
  %522 = vmatpush2.msra.mxu0 0.0
  %523 = vmatprep.subr.mxu0 0.0
  %524 = vmatpush2.msra.mxu0 0.0
  %525 = vmatprep.subr.mxu0 0.0
  %526 = vmatpush2.msra.mxu0 0.0
  %527 = vmatprep.subr.mxu0 0.0
  %528 = vmatpush2.msra.mxu0 0.0
  %529 = vmatprep.subr.mxu0 0.0
  %530 = vmatpush2.msra.mxu0 0.0
  %531 = vmatprep.subr.mxu0 0.0
  %532 = vmatpush2.msra.mxu0 0.0
  %533 = vmatprep.subr.mxu0 0.0
  %534 = vmatpush2.msra.mxu0 0.0
  %535 = vmatprep.subr.mxu0 0.0
  %536 = vmatpush2.msra.mxu0 0.0
  %537 = vmatprep.subr.mxu0 0.0
  %538 = vmatpush2.msra.mxu0 0.0
  %539 = vmatprep.subr.mxu0 0.0
  %540 = vmatpush2.msra.mxu0 0.0
  %541 = vmatprep.subr.mxu0 0.0
  %542 = vmatpush2.msra.mxu0 0.0
  %543 = vmatprep.subr.mxu0 0.0
  %544 = vmatpush2.msra.mxu0 0.0
  %545 = vmatprep.subr.mxu0 0.0
  %546 = vmatpush2.msra.mxu0 0.0
  %547 = vmatprep.subr.mxu0 0.0
  %548 = vmatpush2.msra.mxu0 0.0
  %549 = vmatprep.subr.mxu0 0.0
  %550 = vmatpush2.msra.mxu0 0.0
  %551 = vmatprep.mubr.f32.mxu0 0.0
  %552 = vmatmul.mubr.f32.gmra.mxu0 %v85
  %v553 = vpop.f32.mrf.mxu0
  %v554 = vadd.f32 %v66, %v553
  %v555 = vpop.f32.mrf.mxu0
  %v556 = vadd.f32 %v66, %v555
  %557 = vmatprep.mubr.f32.mxu0 0.0
  %558 = vmatmul.mubr.f32.gmra.mxu0 %v88
  %v559 = vpop.f32.mrf.mxu0
  %v560 = vadd.f32 %v71, %v559
  %v561 = vpop.f32.mrf.mxu0
  %v562 = vadd.f32 %v71, %v561
  %563 = vmatprep.mubr.f32.mxu0 0.0
  %564 = vmatmul.mubr.f32.gmra.mxu0 %v91
  %v565 = vpop.f32.mrf.mxu0
  %v566 = vadd.f32 %v76, %v565
  %v567 = vpop.f32.mrf.mxu0
  %v568 = vadd.f32 %v76, %v567
  %569 = vmatprep.mubr.f32.mxu0 0.0
  %570 = vmatmul.mubr.f32.gmra.mxu0 %v94
  %v571 = vpop.f32.mrf.mxu0
  %v572 = vadd.f32 %v81, %v571
  %v573 = vpop.f32.mrf.mxu0
  %v574 = vadd.f32 %v81, %v573
  %575 = vdwg.mxu0
  %v576 = vmax.f32 %v554, 0.0
  %v577 = vmax.f32 %v556, 0.0
  %v578 = vmax.f32 %v560, 0.0
  %v579 = vmax.f32 %v562, 0.0
  %v580 = vmax.f32 %v566, 0.0
  %v581 = vmax.f32 %v568, 0.0
  %v582 = vmax.f32 %v572, 0.0
  %v583 = vmax.f32 %v574, 0.0
  %584 = vrot.lane.b32.xlu0 %v576, 1
  %v585 = vpop.permute.xlu0 %584
  %586 = vrot.lane.b32.xlu0 %v578, 1
  %v587 = vpop.permute.xlu0 %586
  %588 = vrot.lane.b32.xlu0 %v580, 1
  %v589 = vpop.permute.xlu0 %588
  %590 = vrot.lane.b32.xlu0 %v582, 1
  %v591 = vpop.permute.xlu0 %590
  %592 = vrot.lane.b32.xlu0 %v577, 1
  %v593 = vpop.permute.xlu0 %592
  %594 = vrot.lane.b32.xlu0 %v579, 1
  %v595 = vpop.permute.xlu0 %594
  %596 = vrot.lane.b32.xlu0 %v581, 1
  %v597 = vpop.permute.xlu0 %596
  %598 = vrot.lane.b32.xlu0 %v583, 1
  %v599 = vpop.permute.xlu0 %598
  %v600 = vsel %vm211, %v585, %v593
  %v601 = vsel %vm211, %v587, %v595
  %v602 = vsel %vm211, %v589, %v597
  %v603 = vsel %vm211, %v591, %v599
  %v604 = vsel %vm211, %v593, %v585
  %v605 = vsel %vm211, %v595, %v587
  %v606 = vsel %vm211, %v597, %v589
  %v607 = vsel %vm211, %v599, %v591
  %v608 = vmul.f32 %v604, %v234
  %v609 = vmul.f32 %v600, %v238
  %v610 = vmul.f32 %v605, %v234
  %v611 = vmul.f32 %v601, %v238
  %v612 = vmul.f32 %v606, %v234
  %v613 = vmul.f32 %v602, %v238
  %v614 = vmul.f32 %v607, %v234
  %v615 = vmul.f32 %v603, %v238
  %616 = vrot.lane.b32.xlu0 %v576, 127
  %v617 = vpop.permute.xlu0 %616
  %618 = vrot.lane.b32.xlu0 %v578, 127
  %v619 = vpop.permute.xlu0 %618
  %620 = vrot.lane.b32.xlu0 %v580, 127
  %v621 = vpop.permute.xlu0 %620
  %622 = vrot.lane.b32.xlu0 %v582, 127
  %v623 = vpop.permute.xlu0 %622
  %624 = vrot.lane.b32.xlu0 %v577, 127
  %v625 = vpop.permute.xlu0 %624
  %626 = vrot.lane.b32.xlu0 %v579, 127
  %v627 = vpop.permute.xlu0 %626
  %628 = vrot.lane.b32.xlu0 %v581, 127
  %v629 = vpop.permute.xlu0 %628
  %630 = vrot.lane.b32.xlu0 %v583, 127
  %v631 = vpop.permute.xlu0 %630
  %v632 = vsel %vm263, %v617, %v625
  %v633 = vsel %vm263, %v619, %v627
  %v634 = vsel %vm263, %v621, %v629
  %v635 = vsel %vm263, %v623, %v631
  %v636 = vsel %vm263, %v625, %v617
  %v637 = vsel %vm263, %v627, %v619
  %v638 = vsel %vm263, %v629, %v621
  %v639 = vsel %vm263, %v631, %v623
  %v640 = vmul.f32 %v632, %v285
  %v641 = vmul.f32 %v636, %v289
  %v642 = vmul.f32 %v633, %v285
  %v643 = vmul.f32 %v637, %v289
  %v644 = vmul.f32 %v634, %v285
  %v645 = vmul.f32 %v638, %v289
  %v646 = vmul.f32 %v635, %v285
  %v647 = vmul.f32 %v639, %v289
  %648 = vmatprep.subr.mxu0 0.0
  %649 = vmatpush1.msra.mxu0 0.0
  %650 = vmatprep.subr.mxu0 0.0
  %651 = vmatpush1.msra.mxu0 0.0
  %652 = vmatprep.subr.mxu0 0.0
  %653 = vmatpush1.msra.mxu0 0.0
  %654 = vmatprep.subr.mxu0 0.0
  %655 = vmatpush1.msra.mxu0 0.0
  %656 = vmatprep.subr.mxu0 %v647
  %657 = vmatpush1.msra.mxu0 %v646
  %658 = vmatprep.subr.mxu0 %v645
  %659 = vmatpush1.msra.mxu0 %v644
  %660 = vmatprep.subr.mxu0 %v643
  %661 = vmatpush1.msra.mxu0 %v642
  %662 = vmatprep.subr.mxu0 %v641
  %663 = vmatpush1.msra.mxu0 %v640
  %664 = vmatprep.subr.mxu0 %v583
  %665 = vmatpush1.msra.mxu0 %v582
  %666 = vmatprep.subr.mxu0 %v581
  %667 = vmatpush1.msra.mxu0 %v580
  %668 = vmatprep.subr.mxu0 %v579
  %669 = vmatpush1.msra.mxu0 %v578
  %670 = vmatprep.subr.mxu0 %v577
  %671 = vmatpush1.msra.mxu0 %v576
  %672 = vmatprep.subr.mxu0 %v615
  %673 = vmatpush1.msra.mxu0 %v614
  %674 = vmatprep.subr.mxu0 %v613
  %675 = vmatpush1.msra.mxu0 %v612
  %676 = vmatprep.subr.mxu0 %v611
  %677 = vmatpush1.msra.mxu0 %v610
  %678 = vmatprep.subr.mxu0 %v609
  %679 = vmatpush1.msra.mxu0 %v608
  %680 = vmatprep.subr.mxu0 0.0
  %681 = vmatpush2.msra.mxu0 0.0
  %682 = vmatprep.subr.mxu0 0.0
  %683 = vmatpush2.msra.mxu0 0.0
  %684 = vmatprep.subr.mxu0 0.0
  %685 = vmatpush2.msra.mxu0 0.0
  %686 = vmatprep.subr.mxu0 0.0
  %687 = vmatpush2.msra.mxu0 0.0
  %688 = vmatprep.subr.mxu0 0.0
  %689 = vmatpush2.msra.mxu0 0.0
  %690 = vmatprep.subr.mxu0 0.0
  %691 = vmatpush2.msra.mxu0 0.0
  %692 = vmatprep.subr.mxu0 0.0
  %693 = vmatpush2.msra.mxu0 0.0
  %694 = vmatprep.subr.mxu0 0.0
  %695 = vmatpush2.msra.mxu0 0.0
  %696 = vmatprep.subr.mxu0 0.0
  %697 = vmatpush2.msra.mxu0 0.0
  %698 = vmatprep.subr.mxu0 0.0
  %699 = vmatpush2.msra.mxu0 0.0
  %700 = vmatprep.subr.mxu0 0.0
  %701 = vmatpush2.msra.mxu0 0.0
  %702 = vmatprep.subr.mxu0 0.0
  %703 = vmatpush2.msra.mxu0 0.0
  %704 = vmatprep.subr.mxu0 0.0
  %705 = vmatpush2.msra.mxu0 0.0
  %706 = vmatprep.subr.mxu0 0.0
  %707 = vmatpush2.msra.mxu0 0.0
  %708 = vmatprep.subr.mxu0 0.0
  %709 = vmatpush2.msra.mxu0 0.0
  %710 = vmatprep.subr.mxu0 0.0
  %711 = vmatpush2.msra.mxu0 0.0
  %712 = vmatprep.mubr.f32.mxu0 0.0
  %713 = vmatmul.mubr.f32.gmra.mxu0 %v300
  %v714 = vpop.f32.mrf.mxu0
  %v715 = vadd.f32 0.0, %v714
  %v716 = vpop.f32.mrf.mxu0
  %v717 = vadd.f32 0.0, %v716
  %718 = vmatprep.mubr.f32.mxu0 0.0
  %719 = vmatmul.mubr.f32.gmra.mxu0 %v303
  %v720 = vpop.f32.mrf.mxu0
  %v721 = vadd.f32 0.0, %v720
  %v722 = vpop.f32.mrf.mxu0
  %v723 = vadd.f32 0.0, %v722
  %724 = vmatprep.mubr.f32.mxu0 0.0
  %725 = vmatmul.mubr.f32.gmra.mxu0 %v306
  %v726 = vpop.f32.mrf.mxu0
  %v727 = vadd.f32 0.0, %v726
  %v728 = vpop.f32.mrf.mxu0
  %v729 = vadd.f32 0.0, %v728
  %730 = vdwg.mxu0
  %731 = vrot.lane.b32.xlu0 %v715, 16
  %v732 = vpop.permute.xlu0 %731
  %733 = vrot.lane.b32.xlu0 %v717, 16
  %v734 = vpop.permute.xlu0 %733
  %v735 = vsel %vm395, %v732, %v734
  %v736 = vsel %vm395, %v734, %v732
  %v737 = vmul.f32 %v736, %v411
  %v738 = vmul.f32 %v735, %v415
  %739 = vrot.lane.b32.xlu0 %v727, 112
  %v740 = vpop.permute.xlu0 %739
  %741 = vrot.lane.b32.xlu0 %v729, 112
  %v742 = vpop.permute.xlu0 %741
  %v743 = vsel %vm422, %v740, %v742
  %v744 = vsel %vm422, %v742, %v740
  %v745 = vmul.f32 %v743, %v438
  %v746 = vmul.f32 %v744, %v442
  %v747 = vadd.f32 %v721, %v448
  %v748 = vadd.f32 %v723, %v448
  %v749 = vadd.f32 %v747, %v737
  %v750 = vadd.f32 %v748, %v738
  %v751 = vadd.f32 %v749, %v745
  %v752 = vadd.f32 %v750, %v746
  %v755 = vcombine.low %v751, %v752
  %s757 = scalar_lea.vmem %s7, 8
  %758 = vst [vmem:[%s757] sm:$0x77] %v755
  // Predicated region
  $region30: #{aux_decoder_forward.1} parent=0 // pred_check
    _
  $region31: #{aux_decoder_forward.1} parent=0 // pred_check_branch
    %760 = sbr.rel (0) target = $region33
  $region32: #{aux_decoder_forward.1} parent=0 // pred_region
    _
  $region33: #{aux_decoder_forward.1} parent=0 // pred_fallthru
    _
  // Predicated region
  $region34: #{aux_decoder_forward.1} parent=0 // pred_check
    _
  $region35: #{aux_decoder_forward.1} parent=0 // pred_check_branch
    %762 = sbr.rel (0) target = $region37
  $region36: #{aux_decoder_forward.1} parent=0 // pred_region
    _
  $region37: #{aux_decoder_forward.1} parent=0 // pred_fallthru
    _

</llo_original>
